<compile_context>
chip_gen: v7x
topology: tpu7x:2x2x1
jax: 0.10.0
libtpu: 0.0.40
codegen_flags: <defaults>
</compile_context>

<pallas_src>
import functools

import jax
import jax.numpy as jnp
from jax import lax
from jax.experimental import pallas as pl
from jax.experimental.pallas import tpu as pltpu

# ---------------- problem configuration (module hyper-params) ----------------
B, C, H, W = 2, 32, 16, 16          # input: (batch, gate_channels, H, W)
RATIO = 16                          # reduction_ratio
CR = C // RATIO                     # hidden channels of the shared MLP
K = 7                               # spatial_kernel
PAD = K // 2
HW = H * W
USE_RESIDUAL = False                # CBAM default


# ------------------------------- Pallas kernel -------------------------------
def cbam_kernel(nb, x_ref, wmlp_ref, wflat_ref, o_ref):
    # nb        : python int -- batch elements handled by this grid step
    # x_ref     : VMEM (nb, C, HW)    -- lane-dense input block
    # wmlp_ref  : VMEM (C, 2*CR)      -- [w1.T | w2] packed MLP weights
    # wflat_ref : VMEM (2*HW, HW)     -- flattened 7x7 conv (zero-padded) matrix
    # o_ref     : VMEM (nb, C, HW)    -- output block
    wmlp = wmlp_ref[...]
    w1t = wmlp[:, :CR]                                     # (C, CR)
    w2 = wmlp[:, CR:]                                      # (C, CR)
    wflat = wflat_ref[...]                                 # (2*HW, HW)

    x_ca_list = []
    pooled_rows = []
    for b in range(nb):
        xb = x_ref[b]                                      # (C, HW)

        # ---------------- channel attention (VPU / XLU only) ----------------
        avg = jnp.mean(xb, axis=1, keepdims=True)          # (C, 1) lane reduce
        mx = jnp.max(xb, axis=1, keepdims=True)            # (C, 1)
        # shared MLP on both pools in one sublane reduce:
        prod = jnp.concatenate([w1t * avg, w1t * mx], axis=1)         # (C, 2*CR)
        h = jnp.maximum(jnp.sum(prod, axis=0, keepdims=True), 0.0)    # (1, 2*CR)
        h_sum = h[:, :CR] + h[:, CR:]                                 # (1, CR)
        ca_logit = jnp.sum(w2 * h_sum, axis=1, keepdims=True)         # (C, 1)
        ca = jax.nn.sigmoid(ca_logit)                                 # (C, 1)
        x_ca = xb * ca                                     # (C, HW), lane-dense
        x_ca_list.append(x_ca)

        # ------------- spatial pooling (sublane reduce, lane-dense) ---------
        avg_c = jnp.mean(x_ca, axis=0, keepdims=True)      # (1, HW)
        max_c = jnp.max(x_ca, axis=0, keepdims=True)       # (1, HW)
        pooled_rows.append(jnp.concatenate([avg_c, max_c], axis=1))   # (1, 2*HW)

    # ---- 7x7 conv (2 -> 1 ch, zero padded) as ONE MXU matmul for all b ------
    pooled_all = (pooled_rows[0] if nb == 1
                  else jnp.concatenate(pooled_rows, axis=0))          # (nb, 2*HW)
    sa_all = jax.nn.sigmoid(
        jnp.dot(pooled_all, wflat, preferred_element_type=jnp.float32))  # (nb, HW)

    for b in range(nb):
        out = x_ca_list[b] * sa_all[b:b + 1]               # x * ca * sa, (C, HW)
        if USE_RESIDUAL:
            out = x_ref[b] + out
        o_ref[b] = out                                     # dense 256-lane store


# ----------------- host-side flattened-conv matrix construction --------------
def _build_wflat(ws):
    """Wflat so that conv(cat([avg, max]))  ==  [avg_flat | max_flat] @ Wflat.

    Wflat[c*HW + y'*W + x', y*W + x] = ws[c, y'-y+PAD, x'-x+PAD]  (0 outside).
    """
    ys = jnp.arange(H)[:, None, None, None]       # source y'
    xs = jnp.arange(W)[None, :, None, None]       # source x'
    yo = jnp.arange(H)[None, None, :, None]       # output y
    xo = jnp.arange(W)[None, None, None, :]       # output x
    ky = ys - yo + PAD                            # (H, 1, H, 1)
    kx = xs - xo + PAD                            # (1, W, 1, W)
    valid = (ky >= 0) & (ky < K) & (kx >= 0) & (kx < K)               # (H, W, H, W)
    w = ws[:, jnp.clip(ky, 0, K - 1), jnp.clip(kx, 0, K - 1)]         # (2, H, W, H, W)
    w = jnp.where(valid[None], w, 0.0)
    return w.reshape(2 * HW, HW).astype(jnp.float32)


# -------------------------- generation-specific gating ------------------------
def _batches_per_block() -> int:
    """v7x has 2 TensorCores/chip -> keep grid=(B,) so each core takes one batch.
    Single-TC chips (v5e/v6e) -> fold the whole batch into one grid step."""
    try:
        kind = jax.devices()[0].device_kind.lower()
    except Exception:
        kind = ""
    if "v7" in kind:
        return 1
    return B


# ------------------------------- host wrapper --------------------------------
@functools.partial(jax.jit, static_argnames="nb")
def _cbam_forward(x, w1, w2, ws, *, nb):
    # x: (B, C, H, W); w1: (CR, C); w2: (C, CR); ws: (2, K, K)
    x_flat = x.reshape(B, C, HW)                  # lane-dense layout (free on host)
    wmlp = jnp.concatenate([w1.T, w2], axis=1)    # (C, 2*CR) packed MLP weights
    wflat = _build_wflat(ws)                      # (2*HW, HW) flattened conv

    out_flat = pl.pallas_call(
        functools.partial(cbam_kernel, nb),
        out_shape=jax.ShapeDtypeStruct((B, C, HW), jnp.float32),
        grid=(B // nb,),
        in_specs=[
            pl.BlockSpec((nb, C, HW), lambda i: (i, 0, 0)),       # x
            pl.BlockSpec((C, 2 * CR), lambda i: (0, 0)),          # [w1.T | w2]
            pl.BlockSpec((2 * HW, HW), lambda i: (0, 0)),         # Wflat
        ],
        out_specs=pl.BlockSpec((nb, C, HW), lambda i: (i, 0, 0)),
        compiler_params=pltpu.CompilerParams(
            dimension_semantics=("parallel",)),
    )(x_flat, wmlp, wflat)
    return out_flat.reshape(B, C, H, W)


def cbam_pallas(x, w1, w2, ws):
    return _cbam_forward(x, w1, w2, ws, nb=_batches_per_block())


# ------------------------------ pure-JAX reference ---------------------------
def cbam_ref(x, w1, w2, ws):
    avg = jnp.mean(x, axis=(2, 3), keepdims=True)            # (B, C, 1, 1)
    mx = jnp.max(x, axis=(2, 3), keepdims=True)

    def mlp(v):
        h = jax.nn.relu(jnp.einsum("oc,bcij->boij", w1, v))
        return jnp.einsum("oc,bcij->boij", w2, h)

    ca = jax.nn.sigmoid(mlp(avg) + mlp(mx))                  # (B, C, 1, 1)
    xc = x * ca
    ac = jnp.mean(xc, axis=1, keepdims=True)
    mc = jnp.max(xc, axis=1, keepdims=True)
    cat = jnp.concatenate([ac, mc], axis=1)                  # (B, 2, H, W)
    conv = lax.conv_general_dilated(
        cat, ws.reshape(1, 2, K, K), (1, 1), [(PAD, PAD), (PAD, PAD)],
        dimension_numbers=("NCHW", "OIHW", "NCHW"),
    )
    sa = jax.nn.sigmoid(conv)
    out = xc * sa
    return x + out if USE_RESIDUAL else out


# ------------------------------------ main ------------------------------------
if __name__ == "__main__":
    key = jax.random.PRNGKey(0)
    k1, k2, k3, kx = jax.random.split(key, 4)

    # deterministic synthetic parameters (shapes from the module's __init__)
    w1 = jax.random.normal(k1, (CR, C), jnp.float32) * 0.1    # Conv2d(C, C//r, 1)
    w2 = jax.random.normal(k2, (C, CR), jnp.float32) * 0.1    # Conv2d(C//r, C, 1)
    ws = jax.random.normal(k3, (2, K, K), jnp.float32) * 0.1  # Conv2d(2, 1, 7)

    x = jax.random.normal(kx, (B, C, H, W), jnp.float32)

    out = cbam_pallas(x, w1, w2, ws)
    jax.block_until_ready(out)

    ref = cbam_ref(x, w1, w2, ws)
    assert out.shape == (B, C, H, W)
    assert jnp.allclose(out, ref, atol=2e-4, rtol=2e-4), "mismatch vs reference"

    print("KERNEL_OK")
</pallas_src>

<mosaic_0001>
module attributes {stable_mosaic.version = 11 : i64} {
  func.func @cbam_kernel(%arg0: i32, %arg1: memref<2x32x256xf32, #tpu.memory_space<vmem>>, %arg2: memref<32x4xf32, #tpu.memory_space<vmem>>, %arg3: memref<512x256xf32, #tpu.memory_space<vmem>>, %arg4: memref<2x32x256xf32, #tpu.memory_space<vmem>>) attributes {dimension_semantics = [#tpu.dimension_semantics<parallel>], iteration_bounds = array<i64: 1>, scalar_prefetch = 0 : i64, scratch_operands = 0 : i64, tpu.core_type = #tpu.core_type<tc>, window_params = [{transform_indices = @transform_0, window_bounds = array<i64: 2, 32, 256>}, {pipeline_mode = #tpu.pipeline_mode<synchronous>, transform_indices = @transform_1, window_bounds = array<i64: 32, 4>}, {pipeline_mode = #tpu.pipeline_mode<synchronous>, transform_indices = @transform_2, window_bounds = array<i64: 512, 256>}, {transform_indices = @transform_3, window_bounds = array<i64: 2, 32, 256>}]} {
    %c0 = arith.constant 0 : index
    %c0_0 = arith.constant 0 : index
    %0 = vector.load %arg2[%c0, %c0_0] : memref<32x4xf32, #tpu.memory_space<vmem>>, vector<32x4xf32>
    %1 = vector.extract_strided_slice %0 {offsets = [0, 0], sizes = [32, 2], strides = [1, 1]} : vector<32x4xf32> to vector<32x2xf32>
    %2 = vector.extract_strided_slice %0 {offsets = [0, 2], sizes = [32, 2], strides = [1, 1]} : vector<32x4xf32> to vector<32x2xf32>
    %c0_1 = arith.constant 0 : index
    %c0_2 = arith.constant 0 : index
    %3 = vector.load %arg3[%c0_1, %c0_2] : memref<512x256xf32, #tpu.memory_space<vmem>>, vector<512x256xf32>
    %c0_3 = arith.constant 0 : index
    %c0_4 = arith.constant 0 : index
    %c0_5 = arith.constant 0 : index
    %4 = vector.load %arg1[%c0_3, %c0_4, %c0_5] : memref<2x32x256xf32, #tpu.memory_space<vmem>>, vector<1x32x256xf32>
    %5 = vector.shape_cast %4 : vector<1x32x256xf32> to vector<32x256xf32>
    %cst = arith.constant dense<0.000000e+00> : vector<32xf32>
    %6 = vector.multi_reduction <add>, %5, %cst [1] : vector<32x256xf32> to vector<32xf32>
    %7 = vector.shape_cast %6 : vector<32xf32> to vector<32x1xf32>
    %cst_6 = arith.constant 2.560000e+02 : f32
    %8 = vector.broadcast %cst_6 : f32 to vector<32x1xf32>
    %9 = arith.divf %7, %8 : vector<32x1xf32>
    %cst_7 = arith.constant dense<0xFF800000> : vector<32xf32>
    %10 = vector.multi_reduction <maximumf>, %5, %cst_7 [1] : vector<32x256xf32> to vector<32xf32>
    %11 = vector.shape_cast %10 : vector<32xf32> to vector<32x1xf32>
    %12 = vector.broadcast %9 : vector<32x1xf32> to vector<32x2xf32>
    %13 = arith.mulf %1, %12 : vector<32x2xf32>
    %14 = vector.broadcast %11 : vector<32x1xf32> to vector<32x2xf32>
    %15 = arith.mulf %1, %14 : vector<32x2xf32>
    %16 = tpu.concatenate %13, %15 in 1 : vector<32x2xf32>, vector<32x2xf32> -> vector<32x4xf32>
    %cst_8 = arith.constant dense<0.000000e+00> : vector<4xf32>
    %17 = vector.multi_reduction <add>, %16, %cst_8 [0] : vector<32x4xf32> to vector<4xf32>
    %18 = vector.shape_cast %17 : vector<4xf32> to vector<1x4xf32>
    %cst_9 = arith.constant 0.000000e+00 : f32
    %19 = vector.broadcast %cst_9 : f32 to vector<1x4xf32>
    %20 = arith.maximumf %18, %19 : vector<1x4xf32>
    %21 = vector.extract_strided_slice %20 {offsets = [0, 0], sizes = [1, 2], strides = [1, 1]} : vector<1x4xf32> to vector<1x2xf32>
    %22 = vector.extract_strided_slice %20 {offsets = [0, 2], sizes = [1, 2], strides = [1, 1]} : vector<1x4xf32> to vector<1x2xf32>
    %23 = arith.addf %21, %22 : vector<1x2xf32>
    %24 = vector.broadcast %23 : vector<1x2xf32> to vector<32x2xf32>
    %25 = arith.mulf %2, %24 : vector<32x2xf32>
    %cst_10 = arith.constant dense<0.000000e+00> : vector<32xf32>
    %26 = vector.multi_reduction <add>, %25, %cst_10 [1] : vector<32x2xf32> to vector<32xf32>
    %27 = vector.shape_cast %26 : vector<32xf32> to vector<32x1xf32>
    %28 = arith.negf %27 : vector<32x1xf32>
    %29 = math.exp %28 : vector<32x1xf32>
    %cst_11 = arith.constant 1.000000e+00 : f32
    %30 = vector.broadcast %cst_11 : f32 to vector<32x1xf32>
    %31 = arith.addf %30, %29 : vector<32x1xf32>
    %32 = arith.divf %30, %31 : vector<32x1xf32>
    %33 = vector.broadcast %32 : vector<32x1xf32> to vector<32x256xf32>
    %34 = arith.mulf %5, %33 : vector<32x256xf32>
    %cst_12 = arith.constant dense<0.000000e+00> : vector<256xf32>
    %35 = vector.multi_reduction <add>, %34, %cst_12 [0] : vector<32x256xf32> to vector<256xf32>
    %36 = vector.shape_cast %35 : vector<256xf32> to vector<1x256xf32>
    %cst_13 = arith.constant 3.200000e+01 : f32
    %37 = vector.broadcast %cst_13 : f32 to vector<1x256xf32>
    %38 = arith.divf %36, %37 : vector<1x256xf32>
    %cst_14 = arith.constant dense<0xFF800000> : vector<256xf32>
    %39 = vector.multi_reduction <maximumf>, %34, %cst_14 [0] : vector<32x256xf32> to vector<256xf32>
    %40 = vector.shape_cast %39 : vector<256xf32> to vector<1x256xf32>
    %41 = tpu.concatenate %38, %40 in 1 : vector<1x256xf32>, vector<1x256xf32> -> vector<1x512xf32>
    %c1 = arith.constant 1 : index
    %c0_15 = arith.constant 0 : index
    %c0_16 = arith.constant 0 : index
    %42 = vector.load %arg1[%c1, %c0_15, %c0_16] : memref<2x32x256xf32, #tpu.memory_space<vmem>>, vector<1x32x256xf32>
    %43 = vector.shape_cast %42 : vector<1x32x256xf32> to vector<32x256xf32>
    %cst_17 = arith.constant dense<0.000000e+00> : vector<32xf32>
    %44 = vector.multi_reduction <add>, %43, %cst_17 [1] : vector<32x256xf32> to vector<32xf32>
    %45 = vector.shape_cast %44 : vector<32xf32> to vector<32x1xf32>
    %cst_18 = arith.constant 2.560000e+02 : f32
    %46 = vector.broadcast %cst_18 : f32 to vector<32x1xf32>
    %47 = arith.divf %45, %46 : vector<32x1xf32>
    %cst_19 = arith.constant dense<0xFF800000> : vector<32xf32>
    %48 = vector.multi_reduction <maximumf>, %43, %cst_19 [1] : vector<32x256xf32> to vector<32xf32>
    %49 = vector.shape_cast %48 : vector<32xf32> to vector<32x1xf32>
    %50 = vector.broadcast %47 : vector<32x1xf32> to vector<32x2xf32>
    %51 = arith.mulf %1, %50 : vector<32x2xf32>
    %52 = vector.broadcast %49 : vector<32x1xf32> to vector<32x2xf32>
    %53 = arith.mulf %1, %52 : vector<32x2xf32>
    %54 = tpu.concatenate %51, %53 in 1 : vector<32x2xf32>, vector<32x2xf32> -> vector<32x4xf32>
    %cst_20 = arith.constant dense<0.000000e+00> : vector<4xf32>
    %55 = vector.multi_reduction <add>, %54, %cst_20 [0] : vector<32x4xf32> to vector<4xf32>
    %56 = vector.shape_cast %55 : vector<4xf32> to vector<1x4xf32>
    %cst_21 = arith.constant 0.000000e+00 : f32
    %57 = vector.broadcast %cst_21 : f32 to vector<1x4xf32>
    %58 = arith.maximumf %56, %57 : vector<1x4xf32>
    %59 = vector.extract_strided_slice %58 {offsets = [0, 0], sizes = [1, 2], strides = [1, 1]} : vector<1x4xf32> to vector<1x2xf32>
    %60 = vector.extract_strided_slice %58 {offsets = [0, 2], sizes = [1, 2], strides = [1, 1]} : vector<1x4xf32> to vector<1x2xf32>
    %61 = arith.addf %59, %60 : vector<1x2xf32>
    %62 = vector.broadcast %61 : vector<1x2xf32> to vector<32x2xf32>
    %63 = arith.mulf %2, %62 : vector<32x2xf32>
    %cst_22 = arith.constant dense<0.000000e+00> : vector<32xf32>
    %64 = vector.multi_reduction <add>, %63, %cst_22 [1] : vector<32x2xf32> to vector<32xf32>
    %65 = vector.shape_cast %64 : vector<32xf32> to vector<32x1xf32>
    %66 = arith.negf %65 : vector<32x1xf32>
    %67 = math.exp %66 : vector<32x1xf32>
    %cst_23 = arith.constant 1.000000e+00 : f32
    %68 = vector.broadcast %cst_23 : f32 to vector<32x1xf32>
    %69 = arith.addf %68, %67 : vector<32x1xf32>
    %70 = arith.divf %68, %69 : vector<32x1xf32>
    %71 = vector.broadcast %70 : vector<32x1xf32> to vector<32x256xf32>
    %72 = arith.mulf %43, %71 : vector<32x256xf32>
    %cst_24 = arith.constant dense<0.000000e+00> : vector<256xf32>
    %73 = vector.multi_reduction <add>, %72, %cst_24 [0] : vector<32x256xf32> to vector<256xf32>
    %74 = vector.shape_cast %73 : vector<256xf32> to vector<1x256xf32>
    %cst_25 = arith.constant 3.200000e+01 : f32
    %75 = vector.broadcast %cst_25 : f32 to vector<1x256xf32>
    %76 = arith.divf %74, %75 : vector<1x256xf32>
    %cst_26 = arith.constant dense<0xFF800000> : vector<256xf32>
    %77 = vector.multi_reduction <maximumf>, %72, %cst_26 [0] : vector<32x256xf32> to vector<256xf32>
    %78 = vector.shape_cast %77 : vector<256xf32> to vector<1x256xf32>
    %79 = tpu.concatenate %76, %78 in 1 : vector<1x256xf32>, vector<1x256xf32> -> vector<1x512xf32>
    %80 = tpu.concatenate %41, %79 in 0 : vector<1x512xf32>, vector<1x512xf32> -> vector<2x512xf32>
    %cst_27 = arith.constant dense<0.000000e+00> : vector<2x256xf32>
    %81 = tpu.matmul %80, %3, %cst_27 {dimension_numbers = #tpu.dot_dimension_numbers<[1], [0], [0], [1], [0, 0, 1, 1], [], []>} : vector<2x512xf32>, vector<512x256xf32>, vector<2x256xf32> -> vector<2x256xf32>
    %82 = arith.negf %81 : vector<2x256xf32>
    %83 = math.exp %82 : vector<2x256xf32>
    %cst_28 = arith.constant 1.000000e+00 : f32
    %84 = vector.broadcast %cst_28 : f32 to vector<2x256xf32>
    %85 = arith.addf %84, %83 : vector<2x256xf32>
    %86 = arith.divf %84, %85 : vector<2x256xf32>
    %87 = vector.extract_strided_slice %86 {offsets = [0, 0], sizes = [1, 256], strides = [1, 1]} : vector<2x256xf32> to vector<1x256xf32>
    %88 = vector.broadcast %87 : vector<1x256xf32> to vector<32x256xf32>
    %89 = arith.mulf %34, %88 : vector<32x256xf32>
    %c0_29 = arith.constant 0 : index
    %c0_30 = arith.constant 0 : index
    %c0_31 = arith.constant 0 : index
    %90 = vector.load %arg4[%c0_29, %c0_30, %c0_31] : memref<2x32x256xf32, #tpu.memory_space<vmem>>, vector<1x32x256xf32>
    %91 = vector.shape_cast %90 : vector<1x32x256xf32> to vector<32x256xf32>
    %92 = vector.shape_cast %89 : vector<32x256xf32> to vector<1x32x256xf32>
    tpu.vector_store %arg4[%c0_29, %c0_30, %c0_31], %92 {strides = array<i32>} : memref<2x32x256xf32, #tpu.memory_space<vmem>>, vector<1x32x256xf32>,
    %93 = vector.extract_strided_slice %86 {offsets = [1, 0], sizes = [1, 256], strides = [1, 1]} : vector<2x256xf32> to vector<1x256xf32>
    %94 = vector.broadcast %93 : vector<1x256xf32> to vector<32x256xf32>
    %95 = arith.mulf %72, %94 : vector<32x256xf32>
    %c1_32 = arith.constant 1 : index
    %c0_33 = arith.constant 0 : index
    %c0_34 = arith.constant 0 : index
    %96 = vector.load %arg4[%c1_32, %c0_33, %c0_34] : memref<2x32x256xf32, #tpu.memory_space<vmem>>, vector<1x32x256xf32>
    %97 = vector.shape_cast %96 : vector<1x32x256xf32> to vector<32x256xf32>
    %98 = vector.shape_cast %95 : vector<32x256xf32> to vector<1x32x256xf32>
    tpu.vector_store %arg4[%c1_32, %c0_33, %c0_34], %98 {strides = array<i32>} : memref<2x32x256xf32, #tpu.memory_space<vmem>>, vector<1x32x256xf32>,
    return
  }
  func.func @transform_0(%arg0: i32) -> (i32, i32, i32) {
    %c0_i32 = arith.constant 0 : i32
    %c0_i32_0 = arith.constant 0 : i32
    %c0_i32_1 = arith.constant 0 : i32
    return %arg0, %c0_i32, %c0_i32_0 : i32, i32, i32
  }
  func.func @transform_1(%arg0: i32) -> (i32, i32) {
    %c0_i32 = arith.constant 0 : i32
    %c0_i32_0 = arith.constant 0 : i32
    %c0_i32_1 = arith.constant 0 : i32
    return %c0_i32, %c0_i32_0 : i32, i32
  }
  func.func @transform_2(%arg0: i32) -> (i32, i32) {
    %c0_i32 = arith.constant 0 : i32
    %c0_i32_0 = arith.constant 0 : i32
    %c0_i32_1 = arith.constant 0 : i32
    return %c0_i32, %c0_i32_0 : i32, i32
  }
  func.func @transform_3(%arg0: i32) -> (i32, i32, i32) {
    %c0_i32 = arith.constant 0 : i32
    %c0_i32_0 = arith.constant 0 : i32
    %c0_i32_1 = arith.constant 0 : i32
    return %arg0, %c0_i32, %c0_i32_0 : i32, i32, i32
  }
}

</mosaic_0001>

<llo_original>
// kernel: _cbam_forward.1
$region0: #{_cbam_forward.1}
  #allocation0 [shape = 'u32[]', space=smem, size = 0x4, offset = 0x4, fixed_abs, tag = 'smem constant byte address 0x4 - core index']
  #allocation1 [shape = 'u32[144,128]{1,0:T(1,128)}', space=vmem, size = 0x12000, scoped, tag = 'internal scratch']
  %s0 = inlined_call_operand.vmem [shape: f32[2,32,256], index: 0, kind: input, shape index: {}]
  %s1 = inlined_call_operand.vmem [shape: f32[32,4], index: 1, kind: input, shape index: {}]
  %s2 = inlined_call_operand.vmem [shape: f32[512,256], index: 2, kind: input, shape index: {}]
  %s3 = inlined_call_operand.vmem [shape: f32[2,32,256], index: 3, kind: output, shape index: {}]
  %s4 = sld [smem:[#allocation0]]
  $region22: #{_cbam_forward.1} parent=0
    _
  %s6 = ssub.s32 1, %s4
  %s7 = scalar_select 0, %s6, %s4
  // Predicated region
  $region2: #{_cbam_forward.1} parent=0 // pred_check
    _
  $region3: #{_cbam_forward.1} parent=0 // pred_check_branch
    %9 = sbr.rel (0) target = $region5
  $region4: #{_cbam_forward.1} parent=0 // pred_region
    _
  $region5: #{_cbam_forward.1} parent=0 // pred_fallthru
    _
  // Predicated region
  $region6: #{_cbam_forward.1} parent=0 // pred_check
    _
  $region7: #{_cbam_forward.1} parent=0 // pred_check_branch
    %11 = sbr.rel (0) target = $region9
  $region8: #{_cbam_forward.1} parent=0 // pred_region
    _
  $region9: #{_cbam_forward.1} parent=0 // pred_fallthru
    _
  // Predicated region
  $region10: #{_cbam_forward.1} parent=0 // pred_check
    _
  $region11: #{_cbam_forward.1} parent=0 // pred_check_branch
    %13 = sbr.rel (0) target = $region13
  $region12: #{_cbam_forward.1} parent=0 // pred_region
    _
  $region13: #{_cbam_forward.1} parent=0 // pred_fallthru
    _
  %v14 = vld [vmem:[%s1] sm:$0xff]
  %v15 = vld [vmem:[%s1 + $0x8] sm:$0xff]
  %v16 = vld [vmem:[%s1 + $0x10] sm:$0xff]
  %v17 = vld [vmem:[%s1 + $0x18] sm:$0xff]
  %v18 = vld [vmem:[%s2] sm:$0xff]
  %v19 = vld [vmem:[%s2 + $0x8] sm:$0xff]
  %v20 = vld [vmem:[%s2 + $0x10] sm:$0xff]
  %v21 = vld [vmem:[%s2 + $0x18] sm:$0xff]
  %v22 = vld [vmem:[%s2 + $0x20] sm:$0xff]
  %v23 = vld [vmem:[%s2 + $0x28] sm:$0xff]
  %v24 = vld [vmem:[%s2 + $0x30] sm:$0xff]
  %v25 = vld [vmem:[%s2 + $0x38] sm:$0xff]
  %v26 = vld [vmem:[%s2 + $0x40] sm:$0xff]
  %v27 = vld [vmem:[%s2 + $0x48] sm:$0xff]
  %v28 = vld [vmem:[%s2 + $0x50] sm:$0xff]
  %v29 = vld [vmem:[%s2 + $0x58] sm:$0xff]
  %v30 = vld [vmem:[%s2 + $0x60] sm:$0xff]
  %v31 = vld [vmem:[%s2 + $0x68] sm:$0xff]
  %v32 = vld [vmem:[%s2 + $0x70] sm:$0xff]
  %v33 = vld [vmem:[%s2 + $0x78] sm:$0xff]
  %v34 = vld [vmem:[%s2 + $0x80] sm:$0xff]
  %v35 = vld [vmem:[%s2 + $0x88] sm:$0xff]
  %v36 = vld [vmem:[%s2 + $0x90] sm:$0xff]
  %v37 = vld [vmem:[%s2 + $0x98] sm:$0xff]
  %v38 = vld [vmem:[%s2 + $0xa0] sm:$0xff]
  %v39 = vld [vmem:[%s2 + $0xa8] sm:$0xff]
  %v40 = vld [vmem:[%s2 + $0xb0] sm:$0xff]
  %v41 = vld [vmem:[%s2 + $0xb8] sm:$0xff]
  %v42 = vld [vmem:[%s2 + $0xc0] sm:$0xff]
  %v43 = vld [vmem:[%s2 + $0xc8] sm:$0xff]
  %v44 = vld [vmem:[%s2 + $0xd0] sm:$0xff]
  %v45 = vld [vmem:[%s2 + $0xd8] sm:$0xff]
  %v46 = vld [vmem:[%s2 + $0xe0] sm:$0xff]
  %v47 = vld [vmem:[%s2 + $0xe8] sm:$0xff]
  %v48 = vld [vmem:[%s2 + $0xf0] sm:$0xff]
  %v49 = vld [vmem:[%s2 + $0xf8] sm:$0xff]
  %v50 = vld [vmem:[%s2 + $0x100] sm:$0xff]
  %v51 = vld [vmem:[%s2 + $0x108] sm:$0xff]
  %v52 = vld [vmem:[%s2 + $0x110] sm:$0xff]
  %v53 = vld [vmem:[%s2 + $0x118] sm:$0xff]
  %v54 = vld [vmem:[%s2 + $0x120] sm:$0xff]
  %v55 = vld [vmem:[%s2 + $0x128] sm:$0xff]
  %v56 = vld [vmem:[%s2 + $0x130] sm:$0xff]
  %v57 = vld [vmem:[%s2 + $0x138] sm:$0xff]
  %v58 = vld [vmem:[%s2 + $0x140] sm:$0xff]
  %v59 = vld [vmem:[%s2 + $0x148] sm:$0xff]
  %v60 = vld [vmem:[%s2 + $0x150] sm:$0xff]
  %v61 = vld [vmem:[%s2 + $0x158] sm:$0xff]
  %v62 = vld [vmem:[%s2 + $0x160] sm:$0xff]
  %v63 = vld [vmem:[%s2 + $0x168] sm:$0xff]
  %v64 = vld [vmem:[%s2 + $0x170] sm:$0xff]
  %v65 = vld [vmem:[%s2 + $0x178] sm:$0xff]
  %v66 = vld [vmem:[%s2 + $0x180] sm:$0xff]
  %v67 = vld [vmem:[%s2 + $0x188] sm:$0xff]
  %v68 = vld [vmem:[%s2 + $0x190] sm:$0xff]
  %v69 = vld [vmem:[%s2 + $0x198] sm:$0xff]
  %v70 = vld [vmem:[%s2 + $0x1a0] sm:$0xff]
  %v71 = vld [vmem:[%s2 + $0x1a8] sm:$0xff]
  %v72 = vld [vmem:[%s2 + $0x1b0] sm:$0xff]
  %v73 = vld [vmem:[%s2 + $0x1b8] sm:$0xff]
  %v74 = vld [vmem:[%s2 + $0x1c0] sm:$0xff]
  %v75 = vld [vmem:[%s2 + $0x1c8] sm:$0xff]
  %v76 = vld [vmem:[%s2 + $0x1d0] sm:$0xff]
  %v77 = vld [vmem:[%s2 + $0x1d8] sm:$0xff]
  %v78 = vld [vmem:[%s2 + $0x1e0] sm:$0xff]
  %v79 = vld [vmem:[%s2 + $0x1e8] sm:$0xff]
  %v80 = vld [vmem:[%s2 + $0x1f0] sm:$0xff]
  %v81 = vld [vmem:[%s2 + $0x1f8] sm:$0xff]
  %v82 = vld [vmem:[%s2 + $0x200] sm:$0xff]
  %v83 = vld [vmem:[%s2 + $0x208] sm:$0xff]
  %v84 = vld [vmem:[%s2 + $0x210] sm:$0xff]
  %v85 = vld [vmem:[%s2 + $0x218] sm:$0xff]
  %v86 = vld [vmem:[%s2 + $0x220] sm:$0xff]
  %v87 = vld [vmem:[%s2 + $0x228] sm:$0xff]
  %v88 = vld [vmem:[%s2 + $0x230] sm:$0xff]
  %v89 = vld [vmem:[%s2 + $0x238] sm:$0xff]
  %v90 = vld [vmem:[%s2 + $0x240] sm:$0xff]
  %v91 = vld [vmem:[%s2 + $0x248] sm:$0xff]
  %v92 = vld [vmem:[%s2 + $0x250] sm:$0xff]
  %v93 = vld [vmem:[%s2 + $0x258] sm:$0xff]
  %v94 = vld [vmem:[%s2 + $0x260] sm:$0xff]
  %v95 = vld [vmem:[%s2 + $0x268] sm:$0xff]
  %v96 = vld [vmem:[%s2 + $0x270] sm:$0xff]
  %v97 = vld [vmem:[%s2 + $0x278] sm:$0xff]
  %v98 = vld [vmem:[%s2 + $0x280] sm:$0xff]
  %v99 = vld [vmem:[%s2 + $0x288] sm:$0xff]
  %v100 = vld [vmem:[%s2 + $0x290] sm:$0xff]
  %v101 = vld [vmem:[%s2 + $0x298] sm:$0xff]
  %v102 = vld [vmem:[%s2 + $0x2a0] sm:$0xff]
  %v103 = vld [vmem:[%s2 + $0x2a8] sm:$0xff]
  %v104 = vld [vmem:[%s2 + $0x2b0] sm:$0xff]
  %v105 = vld [vmem:[%s2 + $0x2b8] sm:$0xff]
  %v106 = vld [vmem:[%s2 + $0x2c0] sm:$0xff]
  %v107 = vld [vmem:[%s2 + $0x2c8] sm:$0xff]
  %v108 = vld [vmem:[%s2 + $0x2d0] sm:$0xff]
  %v109 = vld [vmem:[%s2 + $0x2d8] sm:$0xff]
  %v110 = vld [vmem:[%s2 + $0x2e0] sm:$0xff]
  %v111 = vld [vmem:[%s2 + $0x2e8] sm:$0xff]
  %v112 = vld [vmem:[%s2 + $0x2f0] sm:$0xff]
  %v113 = vld [vmem:[%s2 + $0x2f8] sm:$0xff]
  %v114 = vld [vmem:[%s2 + $0x300] sm:$0xff]
  %v115 = vld [vmem:[%s2 + $0x308] sm:$0xff]
  %v116 = vld [vmem:[%s2 + $0x310] sm:$0xff]
  %v117 = vld [vmem:[%s2 + $0x318] sm:$0xff]
  %v118 = vld [vmem:[%s2 + $0x320] sm:$0xff]
  %v119 = vld [vmem:[%s2 + $0x328] sm:$0xff]
  %v120 = vld [vmem:[%s2 + $0x330] sm:$0xff]
  %v121 = vld [vmem:[%s2 + $0x338] sm:$0xff]
  %v122 = vld [vmem:[%s2 + $0x340] sm:$0xff]
  %v123 = vld [vmem:[%s2 + $0x348] sm:$0xff]
  %v124 = vld [vmem:[%s2 + $0x350] sm:$0xff]
  %v125 = vld [vmem:[%s2 + $0x358] sm:$0xff]
  %v126 = vld [vmem:[%s2 + $0x360] sm:$0xff]
  %v127 = vld [vmem:[%s2 + $0x368] sm:$0xff]
  %v128 = vld [vmem:[%s2 + $0x370] sm:$0xff]
  %v129 = vld [vmem:[%s2 + $0x378] sm:$0xff]
  %v130 = vld [vmem:[%s2 + $0x380] sm:$0xff]
  %v131 = vld [vmem:[%s2 + $0x388] sm:$0xff]
  %v132 = vld [vmem:[%s2 + $0x390] sm:$0xff]
  %v133 = vld [vmem:[%s2 + $0x398] sm:$0xff]
  %v134 = vld [vmem:[%s2 + $0x3a0] sm:$0xff]
  %v135 = vld [vmem:[%s2 + $0x3a8] sm:$0xff]
  %v136 = vld [vmem:[%s2 + $0x3b0] sm:$0xff]
  %v137 = vld [vmem:[%s2 + $0x3b8] sm:$0xff]
  %v138 = vld [vmem:[%s2 + $0x3c0] sm:$0xff]
  %v139 = vld [vmem:[%s2 + $0x3c8] sm:$0xff]
  %v140 = vld [vmem:[%s2 + $0x3d0] sm:$0xff]
  %v141 = vld [vmem:[%s2 + $0x3d8] sm:$0xff]
  %v142 = vld [vmem:[%s2 + $0x3e0] sm:$0xff]
  %v143 = vld [vmem:[%s2 + $0x3e8] sm:$0xff]
  %v144 = vld [vmem:[%s2 + $0x3f0] sm:$0xff]
  %v145 = vld [vmem:[%s2 + $0x3f8] sm:$0xff]
  %v146 = vld [vmem:[%s0] sm:$0xff]
  %v147 = vld [vmem:[%s0 + $0x8] sm:$0xff]
  %v148 = vld [vmem:[%s0 + $0x10] sm:$0xff]
  %v149 = vld [vmem:[%s0 + $0x18] sm:$0xff]
  %v150 = vld [vmem:[%s0 + $0x20] sm:$0xff]
  %v151 = vld [vmem:[%s0 + $0x28] sm:$0xff]
  %v152 = vld [vmem:[%s0 + $0x30] sm:$0xff]
  %v153 = vld [vmem:[%s0 + $0x38] sm:$0xff]
  %v154 = vadd.f32 %v146, %v147
  %155 = vadd.xlane.f32.xlu0 %v154
  %v156 = vpop.xlane.xlu0 %155
  %v157 = vadd.f32 %v148, %v149
  %158 = vadd.xlane.f32.xlu0 %v157
  %v159 = vpop.xlane.xlu0 %158
  %v160 = vadd.f32 %v150, %v151
  %161 = vadd.xlane.f32.xlu0 %v160
  %v162 = vpop.xlane.xlu0 %161
  %v163 = vadd.f32 %v152, %v153
  %164 = vadd.xlane.f32.xlu0 %v163
  %v165 = vpop.xlane.xlu0 %164
  %v166 = vrcp.pop 256.0
  %v167 = vmul.f32 %v156, %v166
  %v168 = vmul.f32 %v159, %v166
  %v169 = vmul.f32 %v162, %v166
  %v170 = vmul.f32 %v165, %v166
  %v171 = vmax.f32 %v146, %v147
  %172 = vmax.xlane.f32.xlu0 %v171
  %v173 = vpop.xlane.xlu0 %172
  %v174 = vmax.f32 %v148, %v149
  %175 = vmax.xlane.f32.xlu0 %v174
  %v176 = vpop.xlane.xlu0 %175
  %v177 = vmax.f32 %v150, %v151
  %178 = vmax.xlane.f32.xlu0 %v177
  %v179 = vpop.xlane.xlu0 %178
  %v180 = vmax.f32 %v152, %v153
  %181 = vmax.xlane.f32.xlu0 %v180
  %v182 = vpop.xlane.xlu0 %181
  %v183 = vmul.f32 %v14, %v167
  %v184 = vmul.f32 %v15, %v168
  %v185 = vmul.f32 %v16, %v169
  %v186 = vmul.f32 %v17, %v170
  %v187 = vmul.f32 %v14, %v173
  %v188 = vmul.f32 %v15, %v176
  %v189 = vmul.f32 %v16, %v179
  %v190 = vmul.f32 %v17, %v182
  %195 = vrot.lane.b32.xlu0 %v187, 2
  %v196 = vpop.permute.xlu0 %195
  %197 = vrot.lane.b32.xlu0 %v188, 2
  %v198 = vpop.permute.xlu0 %197
  %199 = vrot.lane.b32.xlu0 %v189, 2
  %v200 = vpop.permute.xlu0 %199
  %201 = vrot.lane.b32.xlu0 %v190, 2
  %v202 = vpop.permute.xlu0 %201
  %vm207 = vcmask 15360
  %v208 = vsel %vm207, %v183, %v196
  %v209 = vsel %vm207, %v184, %v198
  %v210 = vsel %vm207, %v185, %v200
  %v211 = vsel %vm207, %v186, %v202
  %vm212 = vcmask 31744
  %v213 = vsel %vm212, %v208, 0.0
  %v214 = vsel %vm212, %v209, 0.0
  %v215 = vadd.f32 %v213, %v214
  %v216 = vsel %vm212, %v210, 0.0
  %v217 = vadd.f32 %v215, %v216
  %v218 = vsel %vm212, %v211, 0.0
  %v219 = vadd.f32 %v217, %v218
  %v220 = vrot.slane %v219, 4
  %v221 = vadd.f32 %v219, %v220
  %v222 = vrot.slane %v221, 2
  %v223 = vadd.f32 %v221, %v222
  %v224 = vrot.slane %v223, 1
  %v225 = vadd.f32 %v223, %v224
  %v226 = vmax.f32 %v225, 0.0
  %228 = vrot.lane.b32.xlu0 %v226, 126
  %v229 = vpop.permute.xlu0 %228
  %v231 = vadd.f32 %v226, %v229
  %v232 = vlaneseq
  %v233 = vshrl.u32 %v232, 7
  %v234 = vsub.s32 0, %v233
  %v235 = vrot.slane %v231, %v234
  %237 = vrot.lane.b32.xlu0 %v235, 2
  %v238 = vpop.permute.xlu0 %237
  %v240 = vmul.f32 %v14, %v238
  %v241 = vmul.f32 %v15, %v238
  %v242 = vmul.f32 %v16, %v238
  %v243 = vmul.f32 %v17, %v238
  %248 = vrot.lane.b32.xlu0 %v240, 126
  %v249 = vpop.permute.xlu0 %248
  %250 = vrot.lane.b32.xlu0 %v241, 126
  %v251 = vpop.permute.xlu0 %250
  %252 = vrot.lane.b32.xlu0 %v242, 126
  %v253 = vpop.permute.xlu0 %252
  %254 = vrot.lane.b32.xlu0 %v243, 126
  %v255 = vpop.permute.xlu0 %254
  %v260 = vsel %vm207, %v249, 0.0
  %261 = vadd.xlane.f32.xlu0 %v260
  %v262 = vpop.xlane.xlu0 %261
  %v263 = vsel %vm207, %v251, 0.0
  %264 = vadd.xlane.f32.xlu0 %v263
  %v265 = vpop.xlane.xlu0 %264
  %v266 = vsel %vm207, %v253, 0.0
  %267 = vadd.xlane.f32.xlu0 %v266
  %v268 = vpop.xlane.xlu0 %267
  %v269 = vsel %vm207, %v255, 0.0
  %270 = vadd.xlane.f32.xlu0 %v269
  %v271 = vpop.xlane.xlu0 %270
  %v272 = vxor.u32 %v262, 2147483648
  %v273 = vxor.u32 %v265, 2147483648
  %v274 = vxor.u32 %v268, 2147483648
  %v275 = vxor.u32 %v271, 2147483648
  %v276 = vmul.f32 %v272, 1.442695
  %v277 = vpow.pop %v276
  %v278 = vmul.f32 %v273, 1.442695
  %v279 = vpow.pop %v278
  %v280 = vmul.f32 %v274, 1.442695
  %v281 = vpow.pop %v280
  %v282 = vmul.f32 %v275, 1.442695
  %v283 = vpow.pop %v282
  %v284 = vadd.f32 %v277, 1.0
  %v285 = vadd.f32 %v279, 1.0
  %v286 = vadd.f32 %v281, 1.0
  %v287 = vadd.f32 %v283, 1.0
  %v288 = vrcp.pop %v284
  %v289 = vmul.f32 1.0, %v288
  %v290 = vrcp.pop %v285
  %v291 = vmul.f32 1.0, %v290
  %v292 = vrcp.pop %v286
  %v293 = vmul.f32 1.0, %v292
  %v294 = vrcp.pop %v287
  %v295 = vmul.f32 1.0, %v294
  %v296 = vmul.f32 %v146, %v289
  %v297 = vmul.f32 %v147, %v289
  %v298 = vmul.f32 %v148, %v291
  %v299 = vmul.f32 %v149, %v291
  %v300 = vmul.f32 %v150, %v293
  %v301 = vmul.f32 %v151, %v293
  %v302 = vmul.f32 %v152, %v295
  %v303 = vmul.f32 %v153, %v295
  %v304 = vadd.f32 %v296, %v298
  %v305 = vadd.f32 %v304, %v300
  %v306 = vadd.f32 %v305, %v302
  %v307 = vrot.slane %v306, 4
  %v308 = vadd.f32 %v306, %v307
  %v309 = vrot.slane %v308, 2
  %v310 = vadd.f32 %v308, %v309
  %v311 = vrot.slane %v310, 1
  %v312 = vadd.f32 %v310, %v311
  %v313 = vadd.f32 %v297, %v299
  %v314 = vadd.f32 %v313, %v301
  %v315 = vadd.f32 %v314, %v303
  %v316 = vrot.slane %v315, 4
  %v317 = vadd.f32 %v315, %v316
  %v318 = vrot.slane %v317, 2
  %v319 = vadd.f32 %v317, %v318
  %v320 = vrot.slane %v319, 1
  %v321 = vadd.f32 %v319, %v320
  %v322 = vrcp.pop 32.0
  %v323 = vmul.f32 %v312, %v322
  %v324 = vmul.f32 %v321, %v322
  %v325 = vmax.f32 %v296, %v300
  %v326 = vmax.f32 %v298, %v302
  %v327 = vmax.f32 %v325, %v326
  %v328 = vrot.slane %v327, 4
  %v329 = vmax.f32 %v327, %v328
  %v330 = vrot.slane %v329, 2
  %v331 = vmax.f32 %v329, %v330
  %v332 = vrot.slane %v331, 1
  %v333 = vmax.f32 %v331, %v332
  %v334 = vmax.f32 %v297, %v301
  %v335 = vmax.f32 %v299, %v303
  %v336 = vmax.f32 %v334, %v335
  %v337 = vrot.slane %v336, 4
  %v338 = vmax.f32 %v336, %v337
  %v339 = vrot.slane %v338, 2
  %v340 = vmax.f32 %v338, %v339
  %v341 = vrot.slane %v340, 1
  %v342 = vmax.f32 %v340, %v341
  %s343 = scalar_lea.vmem %s0, 64
  %v344 = vld [vmem:[%s343] sm:$0xff]
  %v345 = vld [vmem:[%s343 + $0x8] sm:$0xff]
  %v346 = vld [vmem:[%s343 + $0x10] sm:$0xff]
  %v347 = vld [vmem:[%s343 + $0x18] sm:$0xff]
  %v348 = vld [vmem:[%s343 + $0x20] sm:$0xff]
  %v349 = vld [vmem:[%s343 + $0x28] sm:$0xff]
  %v350 = vld [vmem:[%s343 + $0x30] sm:$0xff]
  %v351 = vld [vmem:[%s343 + $0x38] sm:$0xff]
  %v352 = vadd.f32 %v344, %v345
  %353 = vadd.xlane.f32.xlu0 %v352
  %v354 = vpop.xlane.xlu0 %353
  %v355 = vadd.f32 %v346, %v347
  %356 = vadd.xlane.f32.xlu0 %v355
  %v357 = vpop.xlane.xlu0 %356
  %v358 = vadd.f32 %v348, %v349
  %359 = vadd.xlane.f32.xlu0 %v358
  %v360 = vpop.xlane.xlu0 %359
  %v361 = vadd.f32 %v350, %v351
  %362 = vadd.xlane.f32.xlu0 %v361
  %v363 = vpop.xlane.xlu0 %362
  %v364 = vmul.f32 %v354, %v166
  %v365 = vmul.f32 %v357, %v166
  %v366 = vmul.f32 %v360, %v166
  %v367 = vmul.f32 %v363, %v166
  %v368 = vmax.f32 %v344, %v345
  %369 = vmax.xlane.f32.xlu0 %v368
  %v370 = vpop.xlane.xlu0 %369
  %v371 = vmax.f32 %v346, %v347
  %372 = vmax.xlane.f32.xlu0 %v371
  %v373 = vpop.xlane.xlu0 %372
  %v374 = vmax.f32 %v348, %v349
  %375 = vmax.xlane.f32.xlu0 %v374
  %v376 = vpop.xlane.xlu0 %375
  %v377 = vmax.f32 %v350, %v351
  %378 = vmax.xlane.f32.xlu0 %v377
  %v379 = vpop.xlane.xlu0 %378
  %v380 = vmul.f32 %v14, %v364
  %v381 = vmul.f32 %v15, %v365
  %v382 = vmul.f32 %v16, %v366
  %v383 = vmul.f32 %v17, %v367
  %v384 = vmul.f32 %v14, %v370
  %v385 = vmul.f32 %v15, %v373
  %v386 = vmul.f32 %v16, %v376
  %v387 = vmul.f32 %v17, %v379
  %392 = vrot.lane.b32.xlu0 %v384, 2
  %v393 = vpop.permute.xlu0 %392
  %394 = vrot.lane.b32.xlu0 %v385, 2
  %v395 = vpop.permute.xlu0 %394
  %396 = vrot.lane.b32.xlu0 %v386, 2
  %v397 = vpop.permute.xlu0 %396
  %398 = vrot.lane.b32.xlu0 %v387, 2
  %v399 = vpop.permute.xlu0 %398
  %v404 = vsel %vm207, %v380, %v393
  %v405 = vsel %vm207, %v381, %v395
  %v406 = vsel %vm207, %v382, %v397
  %v407 = vsel %vm207, %v383, %v399
  %v408 = vsel %vm212, %v404, 0.0
  %v409 = vsel %vm212, %v405, 0.0
  %v410 = vadd.f32 %v408, %v409
  %v411 = vsel %vm212, %v406, 0.0
  %v412 = vadd.f32 %v410, %v411
  %v413 = vsel %vm212, %v407, 0.0
  %v414 = vadd.f32 %v412, %v413
  %v415 = vrot.slane %v414, 4
  %v416 = vadd.f32 %v414, %v415
  %v417 = vrot.slane %v416, 2
  %v418 = vadd.f32 %v416, %v417
  %v419 = vrot.slane %v418, 1
  %v420 = vadd.f32 %v418, %v419
  %v421 = vmax.f32 %v420, 0.0
  %423 = vrot.lane.b32.xlu0 %v421, 126
  %v424 = vpop.permute.xlu0 %423
  %v426 = vadd.f32 %v421, %v424
  %v427 = vlaneseq
  %v428 = vshrl.u32 %v427, 7
  %v429 = vsub.s32 0, %v428
  %v430 = vrot.slane %v426, %v429
  %432 = vrot.lane.b32.xlu0 %v430, 2
  %v433 = vpop.permute.xlu0 %432
  %v435 = vmul.f32 %v14, %v433
  %v436 = vmul.f32 %v15, %v433
  %v437 = vmul.f32 %v16, %v433
  %v438 = vmul.f32 %v17, %v433
  %443 = vrot.lane.b32.xlu0 %v435, 126
  %v444 = vpop.permute.xlu0 %443
  %445 = vrot.lane.b32.xlu0 %v436, 126
  %v446 = vpop.permute.xlu0 %445
  %447 = vrot.lane.b32.xlu0 %v437, 126
  %v448 = vpop.permute.xlu0 %447
  %449 = vrot.lane.b32.xlu0 %v438, 126
  %v450 = vpop.permute.xlu0 %449
  %v455 = vsel %vm207, %v444, 0.0
  %456 = vadd.xlane.f32.xlu0 %v455
  %v457 = vpop.xlane.xlu0 %456
  %v458 = vsel %vm207, %v446, 0.0
  %459 = vadd.xlane.f32.xlu0 %v458
  %v460 = vpop.xlane.xlu0 %459
  %v461 = vsel %vm207, %v448, 0.0
  %462 = vadd.xlane.f32.xlu0 %v461
  %v463 = vpop.xlane.xlu0 %462
  %v464 = vsel %vm207, %v450, 0.0
  %465 = vadd.xlane.f32.xlu0 %v464
  %v466 = vpop.xlane.xlu0 %465
  %v467 = vxor.u32 %v457, 2147483648
  %v468 = vxor.u32 %v460, 2147483648
  %v469 = vxor.u32 %v463, 2147483648
  %v470 = vxor.u32 %v466, 2147483648
  %v471 = vmul.f32 %v467, 1.442695
  %v472 = vpow.pop %v471
  %v473 = vmul.f32 %v468, 1.442695
  %v474 = vpow.pop %v473
  %v475 = vmul.f32 %v469, 1.442695
  %v476 = vpow.pop %v475
  %v477 = vmul.f32 %v470, 1.442695
  %v478 = vpow.pop %v477
  %v479 = vadd.f32 %v472, 1.0
  %v480 = vadd.f32 %v474, 1.0
  %v481 = vadd.f32 %v476, 1.0
  %v482 = vadd.f32 %v478, 1.0
  %v483 = vrcp.pop %v479
  %v484 = vmul.f32 1.0, %v483
  %v485 = vrcp.pop %v480
  %v486 = vmul.f32 1.0, %v485
  %v487 = vrcp.pop %v481
  %v488 = vmul.f32 1.0, %v487
  %v489 = vrcp.pop %v482
  %v490 = vmul.f32 1.0, %v489
  %v491 = vmul.f32 %v344, %v484
  %v492 = vmul.f32 %v345, %v484
  %v493 = vmul.f32 %v346, %v486
  %v494 = vmul.f32 %v347, %v486
  %v495 = vmul.f32 %v348, %v488
  %v496 = vmul.f32 %v349, %v488
  %v497 = vmul.f32 %v350, %v490
  %v498 = vmul.f32 %v351, %v490
  %v499 = vadd.f32 %v491, %v493
  %v500 = vadd.f32 %v499, %v495
  %v501 = vadd.f32 %v500, %v497
  %v502 = vrot.slane %v501, 4
  %v503 = vadd.f32 %v501, %v502
  %v504 = vrot.slane %v503, 2
  %v505 = vadd.f32 %v503, %v504
  %v506 = vrot.slane %v505, 1
  %v507 = vadd.f32 %v505, %v506
  %v508 = vadd.f32 %v492, %v494
  %v509 = vadd.f32 %v508, %v496
  %v510 = vadd.f32 %v509, %v498
  %v511 = vrot.slane %v510, 4
  %v512 = vadd.f32 %v510, %v511
  %v513 = vrot.slane %v512, 2
  %v514 = vadd.f32 %v512, %v513
  %v515 = vrot.slane %v514, 1
  %v516 = vadd.f32 %v514, %v515
  %v517 = vmul.f32 %v507, %v322
  %v518 = vmul.f32 %v516, %v322
  %v519 = vmax.f32 %v491, %v495
  %v520 = vmax.f32 %v493, %v497
  %v521 = vmax.f32 %v519, %v520
  %v522 = vrot.slane %v521, 4
  %v523 = vmax.f32 %v521, %v522
  %v524 = vrot.slane %v523, 2
  %v525 = vmax.f32 %v523, %v524
  %v526 = vrot.slane %v525, 1
  %v527 = vmax.f32 %v525, %v526
  %v528 = vmax.f32 %v492, %v496
  %v529 = vmax.f32 %v494, %v498
  %v530 = vmax.f32 %v528, %v529
  %v531 = vrot.slane %v530, 4
  %v532 = vmax.f32 %v530, %v531
  %v533 = vrot.slane %v532, 2
  %v534 = vmax.f32 %v532, %v533
  %v535 = vrot.slane %v534, 1
  %v536 = vmax.f32 %v534, %v535
  %v541 = vrot.slane %v517, 7
  %v542 = vrot.slane %v518, 7
  %v543 = vrot.slane %v527, 7
  %v544 = vrot.slane %v536, 7
  %vm549 = vcmask 1040384
  %v550 = vsel %vm549, %v323, %v541
  %v551 = vsel %vm549, %v324, %v542
  %v552 = vsel %vm549, %v333, %v543
  %v553 = vsel %vm549, %v342, %v544
  %554 = vmatprep.subr.mxu0 %v19
  %555 = vmatpush1.msra.mxu0 %v18
  %556 = vmatprep.subr.mxu0 %v21
  %557 = vmatpush1.msra.mxu0 %v20
  %558 = vmatprep.subr.mxu0 %v23
  %559 = vmatpush1.msra.mxu0 %v22
  %560 = vmatprep.subr.mxu0 %v25
  %561 = vmatpush1.msra.mxu0 %v24
  %562 = vmatprep.subr.mxu0 %v27
  %563 = vmatpush1.msra.mxu0 %v26
  %564 = vmatprep.subr.mxu0 %v29
  %565 = vmatpush1.msra.mxu0 %v28
  %566 = vmatprep.subr.mxu0 %v31
  %567 = vmatpush1.msra.mxu0 %v30
  %568 = vmatprep.subr.mxu0 %v33
  %569 = vmatpush1.msra.mxu0 %v32
  %570 = vmatprep.subr.mxu0 %v35
  %571 = vmatpush1.msra.mxu0 %v34
  %572 = vmatprep.subr.mxu0 %v37
  %573 = vmatpush1.msra.mxu0 %v36
  %574 = vmatprep.subr.mxu0 %v39
  %575 = vmatpush1.msra.mxu0 %v38
  %576 = vmatprep.subr.mxu0 %v41
  %577 = vmatpush1.msra.mxu0 %v40
  %578 = vmatprep.subr.mxu0 %v43
  %579 = vmatpush1.msra.mxu0 %v42
  %580 = vmatprep.subr.mxu0 %v45
  %581 = vmatpush1.msra.mxu0 %v44
  %582 = vmatprep.subr.mxu0 %v47
  %583 = vmatpush1.msra.mxu0 %v46
  %584 = vmatprep.subr.mxu0 %v49
  %585 = vmatpush1.msra.mxu0 %v48
  %586 = vmatprep.subr.mxu0 %v51
  %587 = vmatpush1.msra.mxu0 %v50
  %588 = vmatprep.subr.mxu0 %v53
  %589 = vmatpush1.msra.mxu0 %v52
  %590 = vmatprep.subr.mxu0 %v55
  %591 = vmatpush1.msra.mxu0 %v54
  %592 = vmatprep.subr.mxu0 %v57
  %593 = vmatpush1.msra.mxu0 %v56
  %594 = vmatprep.subr.mxu0 %v59
  %595 = vmatpush1.msra.mxu0 %v58
  %596 = vmatprep.subr.mxu0 %v61
  %597 = vmatpush1.msra.mxu0 %v60
  %598 = vmatprep.subr.mxu0 %v63
  %599 = vmatpush1.msra.mxu0 %v62
  %600 = vmatprep.subr.mxu0 %v65
  %601 = vmatpush1.msra.mxu0 %v64
  %602 = vmatprep.subr.mxu0 %v67
  %603 = vmatpush1.msra.mxu0 %v66
  %604 = vmatprep.subr.mxu0 %v69
  %605 = vmatpush1.msra.mxu0 %v68
  %606 = vmatprep.subr.mxu0 %v71
  %607 = vmatpush1.msra.mxu0 %v70
  %608 = vmatprep.subr.mxu0 %v73
  %609 = vmatpush1.msra.mxu0 %v72
  %610 = vmatprep.subr.mxu0 %v75
  %611 = vmatpush1.msra.mxu0 %v74
  %612 = vmatprep.subr.mxu0 %v77
  %613 = vmatpush1.msra.mxu0 %v76
  %614 = vmatprep.subr.mxu0 %v79
  %615 = vmatpush1.msra.mxu0 %v78
  %616 = vmatprep.subr.mxu0 %v81
  %617 = vmatpush1.msra.mxu0 %v80
  %618 = vmatprep.mubr.f32.mxu0 %v551
  %619 = vmatmul.mubr.f32.gmra.mrb[0].mxu0 %v550
  %v620 = vpop.f32.mrb[0].mxu0
  %v621 = vadd.f32 0.0, %v620
  %v622 = vpop.f32.mrb[0].mxu0
  %v623 = vadd.f32 0.0, %v622
  %624 = vdwg.mxu0
  %625 = vmatprep.subr.mxu0 %v83
  %626 = vmatpush1.msra.mxu0 %v82
  %627 = vmatprep.subr.mxu0 %v85
  %628 = vmatpush1.msra.mxu0 %v84
  %629 = vmatprep.subr.mxu0 %v87
  %630 = vmatpush1.msra.mxu0 %v86
  %631 = vmatprep.subr.mxu0 %v89
  %632 = vmatpush1.msra.mxu0 %v88
  %633 = vmatprep.subr.mxu0 %v91
  %634 = vmatpush1.msra.mxu0 %v90
  %635 = vmatprep.subr.mxu0 %v93
  %636 = vmatpush1.msra.mxu0 %v92
  %637 = vmatprep.subr.mxu0 %v95
  %638 = vmatpush1.msra.mxu0 %v94
  %639 = vmatprep.subr.mxu0 %v97
  %640 = vmatpush1.msra.mxu0 %v96
  %641 = vmatprep.subr.mxu0 %v99
  %642 = vmatpush1.msra.mxu0 %v98
  %643 = vmatprep.subr.mxu0 %v101
  %644 = vmatpush1.msra.mxu0 %v100
  %645 = vmatprep.subr.mxu0 %v103
  %646 = vmatpush1.msra.mxu0 %v102
  %647 = vmatprep.subr.mxu0 %v105
  %648 = vmatpush1.msra.mxu0 %v104
  %649 = vmatprep.subr.mxu0 %v107
  %650 = vmatpush1.msra.mxu0 %v106
  %651 = vmatprep.subr.mxu0 %v109
  %652 = vmatpush1.msra.mxu0 %v108
  %653 = vmatprep.subr.mxu0 %v111
  %654 = vmatpush1.msra.mxu0 %v110
  %655 = vmatprep.subr.mxu0 %v113
  %656 = vmatpush1.msra.mxu0 %v112
  %657 = vmatprep.subr.mxu0 %v115
  %658 = vmatpush1.msra.mxu0 %v114
  %659 = vmatprep.subr.mxu0 %v117
  %660 = vmatpush1.msra.mxu0 %v116
  %661 = vmatprep.subr.mxu0 %v119
  %662 = vmatpush1.msra.mxu0 %v118
  %663 = vmatprep.subr.mxu0 %v121
  %664 = vmatpush1.msra.mxu0 %v120
  %665 = vmatprep.subr.mxu0 %v123
  %666 = vmatpush1.msra.mxu0 %v122
  %667 = vmatprep.subr.mxu0 %v125
  %668 = vmatpush1.msra.mxu0 %v124
  %669 = vmatprep.subr.mxu0 %v127
  %670 = vmatpush1.msra.mxu0 %v126
  %671 = vmatprep.subr.mxu0 %v129
  %672 = vmatpush1.msra.mxu0 %v128
  %673 = vmatprep.subr.mxu0 %v131
  %674 = vmatpush1.msra.mxu0 %v130
  %675 = vmatprep.subr.mxu0 %v133
  %676 = vmatpush1.msra.mxu0 %v132
  %677 = vmatprep.subr.mxu0 %v135
  %678 = vmatpush1.msra.mxu0 %v134
  %679 = vmatprep.subr.mxu0 %v137
  %680 = vmatpush1.msra.mxu0 %v136
  %681 = vmatprep.subr.mxu0 %v139
  %682 = vmatpush1.msra.mxu0 %v138
  %683 = vmatprep.subr.mxu0 %v141
  %684 = vmatpush1.msra.mxu0 %v140
  %685 = vmatprep.subr.mxu0 %v143
  %686 = vmatpush1.msra.mxu0 %v142
  %687 = vmatprep.subr.mxu0 %v145
  %688 = vmatpush1.msra.mxu0 %v144
  %689 = vmatprep.mubr.f32.mxu0 %v553
  %690 = vmatmul.mubr.f32.gmra.mrb[0].mxu0 %v552
  %v691 = vpop.f32.mrb[0].mxu0
  %v692 = vadd.f32 %v621, %v691
  %v693 = vpop.f32.mrb[0].mxu0
  %v694 = vadd.f32 %v623, %v693
  %695 = vdwg.mxu0
  %v696 = vxor.u32 %v692, 2147483648
  %v697 = vxor.u32 %v694, 2147483648
  %v698 = vmul.f32 %v696, 1.442695
  %v699 = vpow.pop %v698
  %v700 = vmul.f32 %v697, 1.442695
  %v701 = vpow.pop %v700
  %v702 = vadd.f32 %v699, 1.0
  %v703 = vadd.f32 %v701, 1.0
  %v704 = vrcp.pop %v702
  %v705 = vmul.f32 1.0, %v704
  %v706 = vrcp.pop %v703
  %v707 = vmul.f32 1.0, %v706
  %v708 = vlaneseq
  %v709 = vshrl.u32 %v708, 7
  %v710 = vsub.s32 0, %v709
  %v711 = vrot.slane %v705, %v710
  %v712 = vlaneseq
  %v713 = vshrl.u32 %v712, 7
  %v714 = vsub.s32 0, %v713
  %v715 = vrot.slane %v707, %v714
  %v716 = vmul.f32 %v296, %v711
  %v717 = vmul.f32 %v297, %v715
  %v718 = vmul.f32 %v298, %v711
  %v719 = vmul.f32 %v299, %v715
  %v720 = vmul.f32 %v300, %v711
  %v721 = vmul.f32 %v301, %v715
  %v722 = vmul.f32 %v302, %v711
  %v723 = vmul.f32 %v303, %v715
  %724 = vst [vmem:[%s3] sm:$0xff] %v716
  %725 = vst [vmem:[%s3 + $0x8] sm:$0xff] %v717
  %726 = vst [vmem:[%s3 + $0x10] sm:$0xff] %v718
  %727 = vst [vmem:[%s3 + $0x18] sm:$0xff] %v719
  %728 = vst [vmem:[%s3 + $0x20] sm:$0xff] %v720
  %729 = vst [vmem:[%s3 + $0x28] sm:$0xff] %v721
  %730 = vst [vmem:[%s3 + $0x30] sm:$0xff] %v722
  %731 = vst [vmem:[%s3 + $0x38] sm:$0xff] %v723
  %v732 = vlaneseq
  %v733 = vshrl.u32 %v732, 7
  %v734 = vsub.s32 1, %v733
  %v735 = vrot.slane %v705, %v734
  %v736 = vlaneseq
  %v737 = vshrl.u32 %v736, 7
  %v738 = vsub.s32 1, %v737
  %v739 = vrot.slane %v707, %v738
  %v740 = vmul.f32 %v491, %v735
  %v741 = vmul.f32 %v492, %v739
  %v742 = vmul.f32 %v493, %v735
  %v743 = vmul.f32 %v494, %v739
  %v744 = vmul.f32 %v495, %v735
  %v745 = vmul.f32 %v496, %v739
  %v746 = vmul.f32 %v497, %v735
  %v747 = vmul.f32 %v498, %v739
  %s748 = scalar_lea.vmem %s3, 64
  %749 = vst [vmem:[%s748] sm:$0xff] %v740
  %750 = vst [vmem:[%s748 + $0x8] sm:$0xff] %v741
  %751 = vst [vmem:[%s748 + $0x10] sm:$0xff] %v742
  %752 = vst [vmem:[%s748 + $0x18] sm:$0xff] %v743
  %753 = vst [vmem:[%s748 + $0x20] sm:$0xff] %v744
  %754 = vst [vmem:[%s748 + $0x28] sm:$0xff] %v745
  %755 = vst [vmem:[%s748 + $0x30] sm:$0xff] %v746
  %756 = vst [vmem:[%s748 + $0x38] sm:$0xff] %v747
  // Predicated region
  $region14: #{_cbam_forward.1} parent=0 // pred_check
    _
  $region15: #{_cbam_forward.1} parent=0 // pred_check_branch
    %758 = sbr.rel (0) target = $region17
  $region16: #{_cbam_forward.1} parent=0 // pred_region
    _
  $region17: #{_cbam_forward.1} parent=0 // pred_fallthru
    _
  // Predicated region
  $region18: #{_cbam_forward.1} parent=0 // pred_check
    _
  $region19: #{_cbam_forward.1} parent=0 // pred_check_branch
    %760 = sbr.rel (0) target = $region21
  $region20: #{_cbam_forward.1} parent=0 // pred_region
    _
  $region21: #{_cbam_forward.1} parent=0 // pred_fallthru
    _

</llo_original>
